<compile_context>
chip_gen: v7x
topology: tpu7x:2x2x1
jax: 0.10.0
libtpu: 0.0.40
codegen_flags: <defaults>
</compile_context>

<pallas_src>
import functools

import jax
import jax.numpy as jnp
from jax import lax
from jax.experimental import pallas as pl
from jax.experimental.pallas import tpu as pltpu

_EPS = 1e-12           # clamp for zero-velocity points (repeated path points)
_TINY_ELEMS = 1 << 15  # below this, pallas_call launch overhead dominates


def _round_up(v, m):
    return ((v + m - 1) // m) * m


def _curvature_kernel(p_ref, out_ref, *, mode, L2, eps):
    # p_ref: (tB, 2L) with x/y interleaved along lanes [x0,y0,x1,y1,...].
    # batch -> sublanes, path points -> lane pairs.
    p = p_ref[...].astype(jnp.float32)

    idx = lax.broadcasted_iota(jnp.int32, p.shape, 1)
    is_even = (idx & 1) == 0        # x lanes (parity of the interleave)
    is_first = idx < 2              # point 0     -> forward difference
    is_last = idx >= L2 - 2         # point L-1   -> backward difference

    def grad(v):
        # np.gradient along the path-point axis; one point == 2 lanes.
        nxt = pltpu.roll(v, shift=L2 - 2, axis=1)   # value at point i+1
        prv = pltpu.roll(v, shift=2, axis=1)        # value at point i-1
        return jnp.where(is_first, nxt - v,
                         jnp.where(is_last, v - prv, (nxt - prv) * 0.5))

    def swap_xy(v):
        # Swap the two lanes of every (x, y) pair:  [a0,b0,a1,b1] -> [b0,a0,b1,a1]
        nxt1 = pltpu.roll(v, shift=L2 - 1, axis=1)
        prv1 = pltpu.roll(v, shift=1, axis=1)
        return jnp.where(is_even, nxt1, prv1)

    d = grad(p)            # (x', y')  interleaved
    dd = grad(d)           # (x'', y'') interleaved
    d_sw = swap_xy(d)      # (y', x')  interleaved
    dd_sw = swap_xy(dd)    # (y'', x'') interleaved

    # Both lanes of a pair end up holding the same per-point value, so the
    # reductions below over 2L lanes equal the reductions over the L points.
    num = jnp.abs(d * dd_sw - d_sw * dd)          # |x'y'' - y'x''|
    speed_sq = d * d + d_sw * d_sw                # x'^2 + y'^2
    inv = lax.rsqrt(jnp.maximum(speed_sq, eps))   # EUP slot
    kappa = num * inv * inv * inv                 # num / speed^3

    if mode == "mean":
        red = jnp.sum(kappa, axis=1, keepdims=True) * (1.0 / L2)
    elif mode == "max":
        red = jnp.max(kappa, axis=1, keepdims=True)
    else:  # "min" (validated in the wrapper)
        red = jnp.min(kappa, axis=1, keepdims=True)
    out_ref[...] = red.astype(out_ref.dtype)      # (tB, 1) per-path metric


def path_curvature_metric(path_point, resolution, method="spline", mode="mean",
                          force_pallas=False):
    """Pallas equivalent of PathCurvatureMetric.forward.

    path_point: (B, L, 2) array -- batch of equal-length paths.
    resolution: scalar, sum(cfg.map_bev['resolution'][:2]) / 2.
    Returns a scalar float32 metric (batch mean of per-path reduced curvature).
    """
    # TODO(synk): split_path_point (ragged per-path segmentation) and the scipy
    # spline fit behind method='spline' have no Pallas equivalent; both methods
    # use the finite-difference curvature of the full equal-length path.
    if mode not in ("mean", "max", "min"):
        raise ValueError(f"Invalid mode: {mode}")
    del method

    path_point = jnp.asarray(path_point)
    B, L, D = path_point.shape
    assert D == 2 and L >= 2
    res = float(resolution)

    if not force_pallas and B * L < _TINY_ELEMS:
        # Tiny problem: launch + DMA latency dwarfs the compute; let XLA fuse.
        return _reference(path_point, res, mode)

    # (B, L, 2) -> (B, 2L): contiguous-view reshape, no HBM round trip.
    L2 = 2 * L
    p = path_point.reshape(B, L2)

    itemsize = jnp.dtype(p.dtype).itemsize
    # Per-sublane-row VMEM footprint: double-buffered input block plus a
    # conservative ~14 live f32 intermediate planes (rolled temps, d, dd,
    # swaps, num, speed, kappa).  12 MiB total fits v5e's 16 MiB default
    # scoped VMEM and leaves plenty of headroom on v6e (128 MiB) / v7x (64 MiB)
    # without touching vmem_limit_bytes.
    row_bytes = L2 * (2 * itemsize + 14 * 4)
    tB = max(8, min(_round_up(B, 8), ((12 << 20) // row_bytes) // 8 * 8))
    # v7x dual-TensorCore: keep at least 2 blocks on the parallel batch axis.
    if B >= 16:
        tB = min(tB, _round_up((B + 1) // 2, 8))
    if tB >= B:
        tB = B  # single full-batch block (allowed even if B % 8 != 0)
    grid_b = -(-B // tB)  # ragged tail -> Pallas-padded last block, no jnp.pad

    kernel = functools.partial(_curvature_kernel, mode=mode, L2=L2,
                               eps=_EPS / (res * res))
    # Output array is exactly (B, 1): out-of-bounds rows of a padded last block
    # are dropped by Pallas, so padded-row garbage never reaches the batch mean.
    per_b = pl.pallas_call(
        kernel,
        out_shape=jax.ShapeDtypeStruct((B, 1), jnp.float32),
        grid=(grid_b,),
        in_specs=[pl.BlockSpec((tB, L2), lambda i: (i, 0))],
        out_specs=pl.BlockSpec((tB, 1), lambda i: (i, 0)),
        compiler_params=pltpu.CompilerParams(
            dimension_semantics=("parallel",)),
    )(p)
    # Curvature scales as 1/s under x -> s*x, so the in-kernel resolution
    # multiply was hoisted: divide the reduced metric by `resolution` instead
    # (the EPS clamp above was rescaled to EPS/res^2 to match exactly).
    return jnp.mean(per_b) / jnp.float32(res)


# ---------------------------------------------------------------------------
# pure-JAX reference (mirrors the finite-difference curvature semantics)
# ---------------------------------------------------------------------------
def _np_gradient_last(v):
    left = v[..., 1:2] - v[..., 0:1]
    right = v[..., -1:] - v[..., -2:-1]
    central = (v[..., 2:] - v[..., :-2]) * 0.5
    return jnp.concatenate([left, central, right], axis=-1)


def _reference(path_point, resolution, mode="mean"):
    p = jnp.asarray(path_point, jnp.float32) * jnp.float32(resolution)
    x, y = p[..., 0], p[..., 1]
    dx, dy = _np_gradient_last(x), _np_gradient_last(y)
    ddx, ddy = _np_gradient_last(dx), _np_gradient_last(dy)
    num = jnp.abs(dx * ddy - dy * ddx)
    speed_sq = jnp.maximum(dx * dx + dy * dy, _EPS)
    kappa = num / (jnp.sqrt(speed_sq) ** 3)
    if mode == "mean":
        per_b = jnp.mean(kappa, axis=-1)
    elif mode == "max":
        per_b = jnp.max(kappa, axis=-1)
    else:
        per_b = jnp.min(kappa, axis=-1)
    return jnp.mean(per_b)


if __name__ == "__main__":
    key = jax.random.PRNGKey(0)

    B, L = 4, 128
    # resolution = sum(cfg.map_bev['resolution'][:2]) / 2 for a (0.5, 0.5) BEV grid
    resolution = 0.5

    # predicted path: random walk (cumulative sum of random steps)
    steps = jax.random.normal(key, (B, L, 2), jnp.float32)
    path_point = jnp.cumsum(steps, axis=1)
    # force a short run of repeated points so the zero-velocity clamp is hit
    path_point = path_point.at[:, 7, :].set(path_point[:, 6, :])
    path_point = path_point.at[:, 8, :].set(path_point[:, 6, :])

    result = path_curvature_metric(path_point, resolution, force_pallas=True)
    result = jax.block_until_ready(result)

    expected = jax.block_until_ready(_reference(path_point, resolution))
    assert jnp.isfinite(result), "kernel produced non-finite metric"
    assert jnp.allclose(result, expected, atol=1e-5, rtol=2e-4), (
        f"mismatch: kernel={result}, reference={expected}")

    print("KERNEL_OK")
</pallas_src>

<mosaic_0001>
module attributes {stable_mosaic.version = 11 : i64} {
  func.func @_curvature_kernel(%arg0: i32, %arg1: memref<4x256xf32, #tpu.memory_space<vmem>>, %arg2: memref<4x1xf32, #tpu.memory_space<vmem>>) attributes {dimension_semantics = [#tpu.dimension_semantics<parallel>], iteration_bounds = array<i64: 1>, scalar_prefetch = 0 : i64, scratch_operands = 0 : i64, tpu.core_type = #tpu.core_type<tc>, window_params = [{transform_indices = @transform_0, window_bounds = array<i64: 4, 256>}, {transform_indices = @transform_1, window_bounds = array<i64: 4, 1>}]} {
    %c0 = arith.constant 0 : index
    %c0_0 = arith.constant 0 : index
    %0 = vector.load %arg1[%c0, %c0_0] : memref<4x256xf32, #tpu.memory_space<vmem>>, vector<4x256xf32>
    %1 = tpu.iota {dimensions = array<i32: 1>} : vector<4x256xi32>
    %c1_i32 = arith.constant 1 : i32
    %2 = vector.broadcast %c1_i32 : i32 to vector<4x256xi32>
    %3 = arith.andi %1, %2 : vector<4x256xi32>
    %c0_i32 = arith.constant 0 : i32
    %4 = vector.broadcast %c0_i32 : i32 to vector<4x256xi32>
    %5 = arith.cmpi eq, %3, %4 : vector<4x256xi32>
    %c2_i32 = arith.constant 2 : i32
    %6 = vector.broadcast %c2_i32 : i32 to vector<4x256xi32>
    %7 = arith.cmpi slt, %1, %6 : vector<4x256xi32>
    %c254_i32 = arith.constant 254 : i32
    %8 = vector.broadcast %c254_i32 : i32 to vector<4x256xi32>
    %9 = arith.cmpi sge, %1, %8 : vector<4x256xi32>
    %c254_i32_1 = arith.constant 254 : i32
    %10 = tpu.dynamic_rotate %0 by %c254_i32_1 dim 1 : vector<4x256xf32>, i32 -> vector<4x256xf32>
    %c2_i32_2 = arith.constant 2 : i32
    %11 = tpu.dynamic_rotate %0 by %c2_i32_2 dim 1 : vector<4x256xf32>, i32 -> vector<4x256xf32>
    %12 = arith.subf %10, %0 : vector<4x256xf32>
    %13 = arith.subf %0, %11 : vector<4x256xf32>
    %14 = arith.subf %10, %11 : vector<4x256xf32>
    %cst = arith.constant 5.000000e-01 : f32
    %15 = vector.broadcast %cst : f32 to vector<4x256xf32>
    %16 = arith.mulf %14, %15 : vector<4x256xf32>
    %17 = arith.select %9, %13, %16 : vector<4x256xi1>, vector<4x256xf32>
    %18 = arith.select %7, %12, %17 : vector<4x256xi1>, vector<4x256xf32>
    %c254_i32_3 = arith.constant 254 : i32
    %19 = tpu.dynamic_rotate %18 by %c254_i32_3 dim 1 : vector<4x256xf32>, i32 -> vector<4x256xf32>
    %c2_i32_4 = arith.constant 2 : i32
    %20 = tpu.dynamic_rotate %18 by %c2_i32_4 dim 1 : vector<4x256xf32>, i32 -> vector<4x256xf32>
    %21 = arith.subf %19, %18 : vector<4x256xf32>
    %22 = arith.subf %18, %20 : vector<4x256xf32>
    %23 = arith.subf %19, %20 : vector<4x256xf32>
    %cst_5 = arith.constant 5.000000e-01 : f32
    %24 = vector.broadcast %cst_5 : f32 to vector<4x256xf32>
    %25 = arith.mulf %23, %24 : vector<4x256xf32>
    %26 = arith.select %9, %22, %25 : vector<4x256xi1>, vector<4x256xf32>
    %27 = arith.select %7, %21, %26 : vector<4x256xi1>, vector<4x256xf32>
    %c255_i32 = arith.constant 255 : i32
    %28 = tpu.dynamic_rotate %18 by %c255_i32 dim 1 : vector<4x256xf32>, i32 -> vector<4x256xf32>
    %c1_i32_6 = arith.constant 1 : i32
    %29 = tpu.dynamic_rotate %18 by %c1_i32_6 dim 1 : vector<4x256xf32>, i32 -> vector<4x256xf32>
    %30 = arith.select %5, %28, %29 : vector<4x256xi1>, vector<4x256xf32>
    %c255_i32_7 = arith.constant 255 : i32
    %31 = tpu.dynamic_rotate %27 by %c255_i32_7 dim 1 : vector<4x256xf32>, i32 -> vector<4x256xf32>
    %c1_i32_8 = arith.constant 1 : i32
    %32 = tpu.dynamic_rotate %27 by %c1_i32_8 dim 1 : vector<4x256xf32>, i32 -> vector<4x256xf32>
    %33 = arith.select %5, %31, %32 : vector<4x256xi1>, vector<4x256xf32>
    %34 = arith.mulf %18, %33 : vector<4x256xf32>
    %35 = arith.mulf %30, %27 : vector<4x256xf32>
    %36 = arith.subf %34, %35 : vector<4x256xf32>
    %37 = math.absf %36 : vector<4x256xf32>
    %38 = arith.mulf %18, %18 : vector<4x256xf32>
    %39 = arith.mulf %30, %30 : vector<4x256xf32>
    %40 = arith.addf %38, %39 : vector<4x256xf32>
    %cst_9 = arith.constant 4.000000e-12 : f32
    %41 = vector.broadcast %cst_9 : f32 to vector<4x256xf32>
    %42 = arith.maximumf %40, %41 : vector<4x256xf32>
    %43 = math.rsqrt %42 : vector<4x256xf32>
    %44 = arith.mulf %37, %43 : vector<4x256xf32>
    %45 = arith.mulf %44, %43 : vector<4x256xf32>
    %46 = arith.mulf %45, %43 : vector<4x256xf32>
    %cst_10 = arith.constant dense<0.000000e+00> : vector<4xf32>
    %47 = vector.multi_reduction <add>, %46, %cst_10 [1] : vector<4x256xf32> to vector<4xf32>
    %48 = vector.shape_cast %47 : vector<4xf32> to vector<4x1xf32>
    %cst_11 = arith.constant 3.906250e-03 : f32
    %49 = vector.broadcast %cst_11 : f32 to vector<4x1xf32>
    %50 = arith.mulf %48, %49 : vector<4x1xf32>
    %c0_12 = arith.constant 0 : index
    %c0_13 = arith.constant 0 : index
    %51 = vector.load %arg2[%c0_12, %c0_13] : memref<4x1xf32, #tpu.memory_space<vmem>>, vector<4x1xf32>
    tpu.vector_store %arg2[%c0_12, %c0_13], %50 {strides = array<i32>} : memref<4x1xf32, #tpu.memory_space<vmem>>, vector<4x1xf32>,
    return
  }
  func.func @transform_0(%arg0: i32) -> (i32, i32) {
    %c0_i32 = arith.constant 0 : i32
    %c0_i32_0 = arith.constant 0 : i32
    return %arg0, %c0_i32 : i32, i32
  }
  func.func @transform_1(%arg0: i32) -> (i32, i32) {
    %c0_i32 = arith.constant 0 : i32
    %c0_i32_0 = arith.constant 0 : i32
    return %arg0, %c0_i32 : i32, i32
  }
}

</mosaic_0001>

<llo_original>
// kernel: tpu_custom_call.1
$region0: #{tpu_custom_call.1}
  #allocation0 [shape = 'u32[]', space=smem, size = 0x4, offset = 0x4, fixed_abs, tag = 'smem constant byte address 0x4 - core index']
  #allocation1 [shape = 'u32[144,128]{1,0:T(1,128)}', space=vmem, size = 0x12000, scoped, tag = 'internal scratch']
  %s0 = inlined_call_operand.hbm [shape: f32[4,256], index: 0, kind: input, shape index: {}]
  %s1 = inlined_call_operand.vmem [shape: f32[4,1], index: 1, kind: output, shape index: {}]
  %s2 = sld [smem:[#allocation0]]
  $region18: #{tpu_custom_call.1} parent=0
    _
  %s4 = ssub.s32 1, %s2
  %s5 = scalar_select 0, %s4, %s2
  $region1: #{tpu_custom_call.1} parent=0
    #allocation2 [shape = 'u8[4096]{0}', space=vmem, size = 0x1000, scoped, tag = 'input window, operand 0, single buffered']
    #allocation3 [shape = 's32[1]{0}', space=sflag, size = 0x4, scoped, tag = 'scoped memory for tpu_custom_call.1']
    %6 = vsyncpa [#allocation3], 0
    // Predicated region
    $region2: #{tpu_custom_call.1} parent=1 // pred_check
      _
    $region3: #{tpu_custom_call.1} parent=1 // pred_check_branch
      %8 = sbr.rel (0) target = $region5
    $region4: #{tpu_custom_call.1} parent=1 // pred_region
      %s10 = ssub.s32 128, 128
      %11 = vsyncadd [#allocation3], %s10
      %s13 = sshll.u32 [#allocation2], 4
      %s14 = int_to_ptr.vmem [resolvable:$true] %s13
      %16 = dma.hbm_to_vmem [thread:$0]  %s0, 128, %s14, [#allocation3]
    $region5: #{tpu_custom_call.1} parent=1 // pred_fallthru
      _
    // Predicated region
    $region6: #{tpu_custom_call.1} parent=1 // pred_check
      _
    $region7: #{tpu_custom_call.1} parent=1 // pred_check_branch
      %18 = sbr.rel (0) target = $region9
    $region8: #{tpu_custom_call.1} parent=1 // pred_region
      %19 = dma.done [#allocation3], 128
    $region9: #{tpu_custom_call.1} parent=1 // pred_fallthru
      _
    %v20 = vld [vmem:[#allocation2] sm:$0xff]
    %v21 = vlaneseq
    %v22 = vand.u32 %v21, 127
    %v23 = vadd.s32 %v22, 128
    %v24 = vand.u32 %v22, 1
    %v25 = vand.u32 %v23, 1
    %vm26 = vcmp.eq.s32.totalorder %v24, 0
    %vm27 = vcmp.eq.s32.totalorder %v25, 0
    %vm28 = vcmp.lt.s32.totalorder %v22, 2
    %vm29 = vcmp.lt.s32.totalorder %v23, 2
    %vm30 = vcmp.ge.s32.totalorder %v22, 254
    %vm31 = vcmp.ge.s32.totalorder %v23, 254
    %v33 = vcombine.high %v20, %v20
    %35 = vrot.lane.b32.xlu0 %v20, 126
    %v36 = vpop.permute.xlu0 %35
    %37 = vrot.lane.b32.xlu0 %v33, 126
    %v38 = vpop.permute.xlu0 %37
    %vm39 = vcmp.lt.s32.totalorder %v22, 126
    %v40 = vsel %vm39, %v36, %v38
    %v41 = vsel %vm39, %v38, %v36
    %42 = vrot.lane.b32.xlu0 %v20, 2
    %v43 = vpop.permute.xlu0 %42
    %44 = vrot.lane.b32.xlu0 %v33, 2
    %v45 = vpop.permute.xlu0 %44
    %v46 = vsel %vm28, %v43, %v45
    %v47 = vsel %vm28, %v45, %v43
    %v48 = vsub.f32 %v40, %v20
    %v49 = vsub.f32 %v41, %v33
    %v52 = vcombine.low %v47, %v46
    %v54 = vsub.f32 %v20, %v52
    %v55 = vsub.f32 %v40, %v47
    %v56 = vsub.f32 %v41, %v46
    %v57 = vmul.f32 %v55, 0.5
    %v58 = vmul.f32 %v56, 0.5
    %v60 = vcombine.high %v54, %v54
    %v62 = vsel %vm30, %v54, %v57
    %v63 = vsel %vm31, %v60, %v58
    %v64 = vsel %vm28, %v48, %v62
    %v65 = vsel %vm29, %v49, %v63
    %66 = vrot.lane.b32.xlu0 %v64, 126
    %v67 = vpop.permute.xlu0 %66
    %68 = vrot.lane.b32.xlu0 %v65, 126
    %v69 = vpop.permute.xlu0 %68
    %v70 = vsel %vm39, %v67, %v69
    %v71 = vsel %vm39, %v69, %v67
    %72 = vrot.lane.b32.xlu0 %v64, 2
    %v73 = vpop.permute.xlu0 %72
    %74 = vrot.lane.b32.xlu0 %v65, 2
    %v75 = vpop.permute.xlu0 %74
    %v76 = vsel %vm28, %v73, %v75
    %v77 = vsel %vm28, %v75, %v73
    %v78 = vsub.f32 %v70, %v64
    %v79 = vsub.f32 %v71, %v65
    %v80 = vsub.f32 %v64, %v77
    %v81 = vsub.f32 %v65, %v76
    %v82 = vsub.f32 %v70, %v77
    %v83 = vsub.f32 %v71, %v76
    %v84 = vmul.f32 %v82, 0.5
    %v85 = vmul.f32 %v83, 0.5
    %v86 = vsel %vm30, %v80, %v84
    %v87 = vsel %vm31, %v81, %v85
    %v88 = vsel %vm28, %v78, %v86
    %v89 = vsel %vm29, %v79, %v87
    %90 = vrot.lane.b32.xlu0 %v64, 127
    %v91 = vpop.permute.xlu0 %90
    %92 = vrot.lane.b32.xlu0 %v65, 127
    %v93 = vpop.permute.xlu0 %92
    %vm94 = vcmp.lt.s32.totalorder %v22, 127
    %v95 = vsel %vm94, %v91, %v93
    %v96 = vsel %vm94, %v93, %v91
    %97 = vrot.lane.b32.xlu0 %v64, 1
    %v98 = vpop.permute.xlu0 %97
    %99 = vrot.lane.b32.xlu0 %v65, 1
    %v100 = vpop.permute.xlu0 %99
    %vm101 = vcmp.lt.s32.totalorder %v22, 1
    %v102 = vsel %vm101, %v98, %v100
    %v103 = vsel %vm101, %v100, %v98
    %v104 = vsel %vm26, %v95, %v103
    %v105 = vsel %vm27, %v96, %v102
    %106 = vrot.lane.b32.xlu0 %v88, 127
    %v107 = vpop.permute.xlu0 %106
    %108 = vrot.lane.b32.xlu0 %v89, 127
    %v109 = vpop.permute.xlu0 %108
    %v110 = vsel %vm94, %v107, %v109
    %v111 = vsel %vm94, %v109, %v107
    %112 = vrot.lane.b32.xlu0 %v88, 1
    %v113 = vpop.permute.xlu0 %112
    %114 = vrot.lane.b32.xlu0 %v89, 1
    %v115 = vpop.permute.xlu0 %114
    %v116 = vsel %vm101, %v113, %v115
    %v117 = vsel %vm101, %v115, %v113
    %v118 = vsel %vm26, %v110, %v117
    %v119 = vsel %vm27, %v111, %v116
    %v120 = vmul.f32 %v64, %v118
    %v121 = vmul.f32 %v65, %v119
    %v122 = vmul.f32 %v104, %v88
    %v123 = vmul.f32 %v105, %v89
    %v124 = vsub.f32 %v120, %v122
    %v125 = vsub.f32 %v121, %v123
    %v126 = vand.u32 2147483647, %v124
    %v127 = vand.u32 2147483647, %v125
    %v128 = vmul.f32 %v64, %v64
    %v129 = vmul.f32 %v65, %v65
    %v130 = vmul.f32 %v104, %v104
    %v131 = vmul.f32 %v105, %v105
    %v132 = vadd.f32 %v128, %v130
    %v133 = vadd.f32 %v129, %v131
    %v134 = vmax.f32 %v132, 4e-12
    %v135 = vmax.f32 %v133, 4e-12
    %v136 = vrsqrt.pop %v134
    %v137 = vrsqrt.pop %v135
    %v138 = vmul.f32 %v126, %v136
    %v139 = vmul.f32 %v127, %v137
    %v140 = vmul.f32 %v138, %v136
    %v141 = vmul.f32 %v139, %v137
    %v142 = vmul.f32 %v140, %v136
    %v143 = vmul.f32 %v141, %v137
    %vm144 = vcmask 1043456
    %v145 = vsel %vm144, %v142, 0.0
    %v146 = vsel %vm144, %v143, 0.0
    %v147 = vadd.f32 %v145, %v146
    %148 = vadd.xlane.f32.xlu0 %v147
    %v149 = vpop.xlane.xlu0 %148
    %v150 = vmul.f32 %v149, 0.00390625
    %vm151 = vcmask 3072
    %152 = vst.msk [vmem:[%s1] sm:$0xf] %vm151, %v150
    // Predicated region
    $region10: #{tpu_custom_call.1} parent=1 // pred_check
      _
    $region11: #{tpu_custom_call.1} parent=1 // pred_check_branch
      %154 = sbr.rel (0) target = $region13
    $region12: #{tpu_custom_call.1} parent=1 // pred_region
      _
    $region13: #{tpu_custom_call.1} parent=1 // pred_fallthru
      _
    // Predicated region
    $region14: #{tpu_custom_call.1} parent=1 // pred_check
      _
    $region15: #{tpu_custom_call.1} parent=1 // pred_check_branch
      %156 = sbr.rel (0) target = $region17
    $region16: #{tpu_custom_call.1} parent=1 // pred_region
      _
    $region17: #{tpu_custom_call.1} parent=1 // pred_fallthru
      _
    %157 = vsyncpa [#allocation3], 1

</llo_original>
